<compile_context>
chip_gen: v5e
topology: v5e:2x2
jax: 0.10.0
libtpu: 0.0.40
codegen_flags: <defaults>
</compile_context>

<pallas_src>
import functools
import math

import numpy as np
import jax
import jax.numpy as jnp
from jax import lax
from jax.experimental import pallas as pl
from jax.experimental.pallas import tpu as pltpu


# ------------------------------- tiling helper ------------------------------ #

def _pick_tile(dim, target, align):
    """Largest t <= target with t % align == 0 and dim % t == 0; else full dim."""
    if dim <= target:
        return dim
    t = (min(target, dim) // align) * align
    while t >= align:
        if dim % t == 0:
            return t
        t -= align
    return dim


# ----------------------------- linear projection ---------------------------- #

def _linear_kernel(x_ref, w_ref, b_ref, o_ref, acc_ref):
    # x: (tm, tk), w: (tn, tk) [PyTorch layout], b: (1, tn); out = x @ w^T + b
    k = pl.program_id(2)

    @pl.when(k == 0)
    def _init():
        acc_ref[...] = jnp.zeros_like(acc_ref)

    # bf16 MXU inputs, f32 accumulation; contract feature dims -> no in-kernel .T
    x = x_ref[...].astype(jnp.bfloat16)
    w = w_ref[...].astype(jnp.bfloat16)
    acc_ref[...] += lax.dot_general(
        x, w, dimension_numbers=(((1,), (1,)), ((), ())),
        preferred_element_type=jnp.float32)

    @pl.when(k == pl.num_programs(2) - 1)
    def _store():
        o_ref[...] = (acc_ref[...] + b_ref[...]).astype(o_ref.dtype)


def pallas_linear(x, w, b, out_dtype=jnp.float32):
    n, d_in = x.shape
    d_out = w.shape[0]
    tm = _pick_tile(n, 256, 8)
    tn = _pick_tile(d_out, 256, 128)
    tk = _pick_tile(d_in, 512, 128)
    grid = (n // tm, d_out // tn, d_in // tk)
    return pl.pallas_call(
        _linear_kernel,
        out_shape=jax.ShapeDtypeStruct((n, d_out), out_dtype),
        grid=grid,
        in_specs=[
            pl.BlockSpec((tm, tk), lambda i, j, k: (i, k)),   # x
            pl.BlockSpec((tn, tk), lambda i, j, k: (j, k)),   # w
            pl.BlockSpec((1, tn), lambda i, j, k: (0, j)),    # b
        ],
        out_specs=pl.BlockSpec((tm, tn), lambda i, j, k: (i, j)),
        scratch_shapes=[pltpu.VMEM((tm, tn), jnp.float32)],
        compiler_params=pltpu.CompilerParams(
            dimension_semantics=("parallel", "parallel", "arbitrary"),
            vmem_limit_bytes=64 * 1024 * 1024),
    )(x, w, b.reshape(1, d_out))


# ----------------------------- attention kernel ----------------------------- #

def _attention_kernel(gamma_ref, tri_ref, mask_ref, q_ref, k_ref, v_ref, o_ref,
                      *, n_heads, zero_pad):
    # One (batch, query-tile) per grid point; all heads handled here.
    Tq, d_model = q_ref.shape
    S = k_ref.shape[0]
    d_k = d_model // n_heads
    scale = jnp.float32(1.0 / math.sqrt(d_k))
    neg_inf = jnp.float32(-1e32)

    q = q_ref[...]                  # (Tq, d_model) bf16
    k = k_ref[...]                  # (S,  d_model) bf16
    v = v_ref[...]                  # (S,  d_model) bf16
    mask0 = mask_ref[...] == 0      # (Tq, S) bool
    tri = tri_ref[...]              # (S, S) f32, tri[l, j] = 1 if l <= j (resident)

    # position_effect = |col - global_row| depends on the query-tile offset, so it is
    # built from two iotas here (cannot be a grid-constant resident block).
    q0 = (pl.program_id(1) * Tq).astype(jnp.float32)
    row = lax.broadcasted_iota(jnp.float32, (Tq, S), 0) + q0
    col = lax.broadcasted_iota(jnp.float32, (Tq, S), 1)
    pos_eff = jnp.abs(col - row)

    qkt_dims = (((1,), (1,)), ((), ()))   # contract feature dim of both -> q @ k^T

    for h in range(n_heads):              # static unroll; heads live in the lane dim
        sl = slice(h * d_k, (h + 1) * d_k)
        qh, kh, vh = q[:, sl], k[:, sl], v[:, sl]

        scores = lax.dot_general(qh, kh, qkt_dims,
                                 preferred_element_type=jnp.float32) * scale

        # ---- first masked softmax -> distance weighting (kept in f32) ----
        s1 = jnp.where(mask0, neg_inf, scores)
        e1 = jnp.exp(s1 - jnp.max(s1, axis=-1, keepdims=True))
        p1 = e1 * pl.reciprocal(jnp.sum(e1, axis=-1, keepdims=True), approx=True)
        # (reference's extra `* mask` is a no-op: masked lanes are already exactly 0)

        # cumsum along keys as an MXU matmul against a resident triangular constant.
        # NOTE: O(S^3); for very long sequences switch to a block-carried cumsum.
        distcum = jnp.dot(p1, tri, preferred_element_type=jnp.float32)
        disttotal = jnp.sum(p1, axis=-1, keepdims=True)
        dist = jnp.sqrt(jnp.clip((disttotal - distcum) * pos_eff, 0.0, None))

        gamma = gamma_ref[h]          # scalar -softplus(gammas[h]) from SMEM
        total_effect = jnp.clip(jnp.exp(dist * gamma), 1e-5, 1e5)

        # ---- second (final) masked softmax over re-weighted scores ----
        s2 = jnp.where(mask0, neg_inf, scores * total_effect)
        e2 = jnp.exp(s2 - jnp.max(s2, axis=-1, keepdims=True))
        attn = e2 * pl.reciprocal(jnp.sum(e2, axis=-1, keepdims=True), approx=True)

        o_ref[:, sl] = jnp.dot(attn.astype(v.dtype), vh,
                               preferred_element_type=jnp.float32).astype(o_ref.dtype)

    if zero_pad:
        # Only the global query row 0 is zeroed -> single-row store on the first tile.
        @pl.when(pl.program_id(1) == 0)
        def _zero_first_query_row():
            o_ref[0:1, :] = jnp.zeros((1, d_model), o_ref.dtype)


def pallas_attention(q, k, v, mask, tri_upper, gamma_neg_softplus, zero_pad, n_heads):
    bs, S, d_model = q.shape
    Tq = _pick_tile(S, 256, 8)
    n_qt = S // Tq
    kernel = functools.partial(_attention_kernel, n_heads=n_heads, zero_pad=zero_pad)
    return pl.pallas_call(
        kernel,
        out_shape=jax.ShapeDtypeStruct((bs, S, d_model), jnp.float32),
        grid=(bs, n_qt),
        in_specs=[
            pl.BlockSpec(memory_space=pltpu.MemorySpace.SMEM),                 # gammas (h,)
            pl.BlockSpec((S, S), lambda b, qi: (0, 0)),                        # tri_upper
            pl.BlockSpec((None, None, Tq, S), lambda b, qi: (0, 0, qi, 0)),    # mask
            pl.BlockSpec((None, Tq, d_model), lambda b, qi: (b, qi, 0)),       # q
            pl.BlockSpec((None, S, d_model), lambda b, qi: (b, 0, 0)),         # k
            pl.BlockSpec((None, S, d_model), lambda b, qi: (b, 0, 0)),         # v
        ],
        out_specs=pl.BlockSpec((None, Tq, d_model), lambda b, qi: (b, qi, 0)),
        compiler_params=pltpu.CompilerParams(
            dimension_semantics=("parallel", "parallel"),
            vmem_limit_bytes=64 * 1024 * 1024),
    )(gamma_neg_softplus, tri_upper, mask, q, k, v)


# -------------------------- module-level wrapper ----------------------------- #

def multihead_attention_forward(params, q_in, k_in, v_in, mask, zero_pad,
                                n_heads, d_k, kq_same):
    bs, seq, d_model = q_in.shape
    assert d_model == n_heads * d_k

    # Q/K/V projections emit bf16 in packed-heads (bs*seq, d_model) layout:
    # the head split becomes a free static lane slice inside the attention kernel.
    k_p = pallas_linear(k_in.reshape(bs * seq, d_model), params["k_w"], params["k_b"],
                        out_dtype=jnp.bfloat16)
    if kq_same:
        q_w, q_b = params["k_w"], params["k_b"]
    else:
        q_w, q_b = params["q_w"], params["q_b"]
    q_p = pallas_linear(q_in.reshape(bs * seq, d_model), q_w, q_b,
                        out_dtype=jnp.bfloat16)
    v_p = pallas_linear(v_in.reshape(bs * seq, d_model), params["v_w"], params["v_b"],
                        out_dtype=jnp.bfloat16)

    qh = q_p.reshape(bs, seq, d_model)
    kh = k_p.reshape(bs, seq, d_model)
    vh = v_p.reshape(bs, seq, d_model)

    # gamma = -softplus(gammas): tiny (h,) elementwise glue, lives in SMEM in-kernel.
    gamma_neg = -jax.nn.softplus(params["gammas"].reshape(n_heads)).astype(jnp.float32)
    # Upper-triangular constant for cumsum-as-matmul (grid-resident, DMA'd once).
    tri_upper = jnp.triu(jnp.ones((seq, seq), jnp.float32))

    attn_out = pallas_attention(qh, kh, vh, mask, tri_upper, gamma_neg,
                                zero_pad, n_heads)

    out = pallas_linear(attn_out.reshape(bs * seq, d_model),
                        params["out_w"], params["out_b"], out_dtype=jnp.float32)
    return out.reshape(bs, seq, d_model)


# ----------------------------- pure-JAX reference ---------------------------- #

def _ref_attention(q, k, v, d_k, mask, zero_pad, gammas):
    scores = jnp.einsum("bhqd,bhkd->bhqk", q, k) / math.sqrt(d_k)
    S = scores.shape[2]
    x1 = jnp.tile(jnp.arange(S)[None, :], (S, 1))    # x1[i, j] = j
    x2 = x1.T                                        # x2[i, j] = i
    scores_ = jnp.where(mask == 0, -1e32, scores)
    scores_ = jax.nn.softmax(scores_, axis=-1)
    scores_ = scores_ * mask
    distcum = jnp.cumsum(scores_, axis=-1)
    disttotal = jnp.sum(scores_, axis=-1, keepdims=True)
    position_effect = jnp.abs(x1 - x2)[None, None].astype(jnp.float32)
    dist_scores = jnp.sqrt(jnp.clip((disttotal - distcum) * position_effect, 0.0, None))
    gamma = -jax.nn.softplus(gammas)[None]           # (1, h, 1, 1)
    total_effect = jnp.clip(jnp.exp(dist_scores * gamma), 1e-5, 1e5)
    scores = scores * total_effect
    scores = jnp.where(mask == 0, -1e32, scores)
    scores = jax.nn.softmax(scores, axis=-1)
    if zero_pad:
        scores = scores.at[:, :, 0, :].set(0.0)
    return jnp.einsum("bhqk,bhkd->bhqd", scores, v)


def _ref_forward(params, q_in, k_in, v_in, mask, zero_pad, n_heads, d_k, kq_same):
    bs, seq, d_model = q_in.shape
    lin = lambda x, w, b: jnp.dot(x, w.T) + b
    k_p = lin(k_in, params["k_w"], params["k_b"])
    q_p = lin(q_in, params["q_w"] if not kq_same else params["k_w"],
              params["q_b"] if not kq_same else params["k_b"])
    v_p = lin(v_in, params["v_w"], params["v_b"])
    split = lambda x: x.reshape(bs, seq, n_heads, d_k).transpose(0, 2, 1, 3)
    out = _ref_attention(split(q_p), split(k_p), split(v_p), d_k, mask, zero_pad,
                         params["gammas"])
    concat = out.transpose(0, 2, 1, 3).reshape(bs, seq, d_model)
    return lin(concat, params["out_w"], params["out_b"])


# ----------------------------------- main ------------------------------------ #

if __name__ == "__main__":
    bs, seq = 2, 8
    d_model, n_heads = 32, 4
    d_k = d_model // n_heads
    kq_same = False
    zero_pad = True

    key = jax.random.PRNGKey(0)
    keys = jax.random.split(key, 8)

    def xavier_uniform(k, shape, fan_in, fan_out):
        bound = math.sqrt(6.0 / (fan_in + fan_out))
        return jax.random.uniform(k, shape, jnp.float32, -bound, bound)

    params = {
        "k_w": xavier_uniform(keys[0], (d_model, d_model), d_model, d_model),
        "k_b": jnp.zeros((d_model,), jnp.float32),
        "q_w": xavier_uniform(keys[1], (d_model, d_model), d_model, d_model),
        "q_b": jnp.zeros((d_model,), jnp.float32),
        "v_w": xavier_uniform(keys[2], (d_model, d_model), d_model, d_model),
        "v_b": jnp.zeros((d_model,), jnp.float32),
        "out_w": xavier_uniform(keys[3], (d_model, d_model), d_model, d_model),
        "out_b": jnp.zeros((d_model,), jnp.float32),
        # gammas: xavier_uniform on (n_heads, 1, 1) -> fan_in=1, fan_out=n_heads
        "gammas": xavier_uniform(keys[4], (n_heads, 1, 1), 1, n_heads),
    }

    q_in = jax.random.normal(keys[5], (bs, seq, d_model), jnp.float32)
    k_in = jax.random.normal(keys[6], (bs, seq, d_model), jnp.float32)
    v_in = jax.random.normal(keys[7], (bs, seq, d_model), jnp.float32)
    # causal mask (1, 1, S, S), 1 = attend, 0 = masked
    mask = jnp.tril(jnp.ones((seq, seq), jnp.float32))[None, None]

    out = multihead_attention_forward(params, q_in, k_in, v_in, mask, zero_pad,
                                      n_heads, d_k, kq_same)
    out = jax.block_until_ready(out)

    # f32 reference (highest precision) -> tolerance reflects the kernel's bf16 MXU inputs.
    with jax.default_matmul_precision("highest"):
        ref = _ref_forward(params, q_in, k_in, v_in, mask, zero_pad, n_heads, d_k,
                           kq_same)
        ref = jax.block_until_ready(ref)

    np.testing.assert_allclose(np.asarray(out), np.asarray(ref), rtol=2e-2, atol=2e-2)
    print("KERNEL_OK")
</pallas_src>

<mosaic_0001>
module attributes {stable_mosaic.version = 11 : i64} {
  func.func @_linear_kernel(%arg0: i32, %arg1: i32, %arg2: i32, %arg3: memref<16x32xf32, #tpu.memory_space<vmem>>, %arg4: memref<32x32xf32, #tpu.memory_space<vmem>>, %arg5: memref<1x32xf32, #tpu.memory_space<vmem>>, %arg6: memref<16x32xbf16, #tpu.memory_space<vmem>>, %arg7: memref<16x32xf32, #tpu.memory_space<vmem>>) attributes {dimension_semantics = [#tpu.dimension_semantics<parallel>, #tpu.dimension_semantics<parallel>, #tpu.dimension_semantics<arbitrary>], iteration_bounds = array<i64: 1, 1, 1>, scalar_prefetch = 0 : i64, scratch_operands = 1 : i64, tpu.core_type = #tpu.core_type<tc>, window_params = [{transform_indices = @transform_0, window_bounds = array<i64: 16, 32>}, {transform_indices = @transform_1, window_bounds = array<i64: 32, 32>}, {transform_indices = @transform_2, window_bounds = array<i64: 1, 32>}, {transform_indices = @transform_3, window_bounds = array<i64: 16, 32>}]} {
    %c0_i32 = arith.constant 0 : i32
    %0 = arith.cmpi eq, %arg2, %c0_i32 : i32
    %1 = arith.extui %0 : i1 to i32
    %c0_i32_0 = arith.constant 0 : i32
    %2 = arith.cmpi ne, %1, %c0_i32_0 : i32
    scf.if %2 {
      %cst_10 = arith.constant 0.000000e+00 : f32
      %14 = vector.broadcast %cst_10 : f32 to vector<16x32xf32>
      %c0_11 = arith.constant 0 : index
      %c0_12 = arith.constant 0 : index
      %15 = vector.load %arg7[%c0_11, %c0_12] : memref<16x32xf32, #tpu.memory_space<vmem>>, vector<16x32xf32>
      tpu.vector_store %arg7[%c0_11, %c0_12], %14 {strides = array<i32>} : memref<16x32xf32, #tpu.memory_space<vmem>>, vector<16x32xf32>,
    } else {
    }
    %c0 = arith.constant 0 : index
    %c0_1 = arith.constant 0 : index
    %3 = vector.load %arg3[%c0, %c0_1] : memref<16x32xf32, #tpu.memory_space<vmem>>, vector<16x32xf32>
    %4 = arith.truncf %3 : vector<16x32xf32> to vector<16x32xbf16>
    %c0_2 = arith.constant 0 : index
    %c0_3 = arith.constant 0 : index
    %5 = vector.load %arg4[%c0_2, %c0_3] : memref<32x32xf32, #tpu.memory_space<vmem>>, vector<32x32xf32>
    %6 = arith.truncf %5 : vector<32x32xf32> to vector<32x32xbf16>
    %c0_4 = arith.constant 0 : index
    %c0_5 = arith.constant 0 : index
    %7 = vector.load %arg7[%c0_4, %c0_5] : memref<16x32xf32, #tpu.memory_space<vmem>>, vector<16x32xf32>
    %cst = arith.constant dense<0.000000e+00> : vector<16x32xf32>
    %8 = tpu.matmul %4, %6, %cst {dimension_numbers = #tpu.dot_dimension_numbers<[1], [1], [0], [0], [0, 0, 1, 0], [], []>} : vector<16x32xbf16>, vector<32x32xbf16>, vector<16x32xf32> -> vector<16x32xf32>
    %9 = arith.addf %7, %8 : vector<16x32xf32>
    %c0_6 = arith.constant 0 : index
    %c0_7 = arith.constant 0 : index
    %10 = vector.load %arg7[%c0_6, %c0_7] : memref<16x32xf32, #tpu.memory_space<vmem>>, vector<16x32xf32>
    tpu.vector_store %arg7[%c0_6, %c0_7], %9 {strides = array<i32>} : memref<16x32xf32, #tpu.memory_space<vmem>>, vector<16x32xf32>,
    %c0_i32_8 = arith.constant 0 : i32
    %11 = arith.cmpi eq, %arg2, %c0_i32_8 : i32
    %12 = arith.extui %11 : i1 to i32
    %c0_i32_9 = arith.constant 0 : i32
    %13 = arith.cmpi ne, %12, %c0_i32_9 : i32
    scf.if %13 {
      %c0_10 = arith.constant 0 : index
      %c0_11 = arith.constant 0 : index
      %14 = vector.load %arg7[%c0_10, %c0_11] : memref<16x32xf32, #tpu.memory_space<vmem>>, vector<16x32xf32>
      %c0_12 = arith.constant 0 : index
      %c0_13 = arith.constant 0 : index
      %15 = vector.load %arg5[%c0_12, %c0_13] : memref<1x32xf32, #tpu.memory_space<vmem>>, vector<1x32xf32>
      %16 = vector.broadcast %15 : vector<1x32xf32> to vector<16x32xf32>
      %17 = arith.addf %14, %16 : vector<16x32xf32>
      %18 = arith.truncf %17 : vector<16x32xf32> to vector<16x32xbf16>
      %c0_14 = arith.constant 0 : index
      %c0_15 = arith.constant 0 : index
      %19 = vector.load %arg6[%c0_14, %c0_15] : memref<16x32xbf16, #tpu.memory_space<vmem>>, vector<16x32xbf16>
      tpu.vector_store %arg6[%c0_14, %c0_15], %18 {strides = array<i32>} : memref<16x32xbf16, #tpu.memory_space<vmem>>, vector<16x32xbf16>,
    } else {
    }
    return
  }
  func.func @transform_0(%arg0: i32, %arg1: i32, %arg2: i32) -> (i32, i32) {
    %c0_i32 = arith.constant 0 : i32
    return %arg0, %arg2 : i32, i32
  }
  func.func @transform_1(%arg0: i32, %arg1: i32, %arg2: i32) -> (i32, i32) {
    %c0_i32 = arith.constant 0 : i32
    return %arg1, %arg2 : i32, i32
  }
  func.func @transform_2(%arg0: i32, %arg1: i32, %arg2: i32) -> (i32, i32) {
    %c0_i32 = arith.constant 0 : i32
    %c0_i32_0 = arith.constant 0 : i32
    return %c0_i32, %arg1 : i32, i32
  }
  func.func @transform_3(%arg0: i32, %arg1: i32, %arg2: i32) -> (i32, i32) {
    %c0_i32 = arith.constant 0 : i32
    return %arg0, %arg1 : i32, i32
  }
}

</mosaic_0001>

<llo_original>
// kernel: tpu_custom_call.1
$region0: #{tpu_custom_call.1}
  #allocation0 [shape = 'u32[]', space=smem, size = 0x4, offset = 0x4, fixed_abs, tag = 'smem constant byte address 0x4 - core index']
  #allocation1 [shape = 'u32[72,128]{1,0:T(1,128)}', space=vmem, size = 0x9000, scoped, tag = 'internal scratch']
  #allocation2 [shape = 'f32[16,32]{1,0:T(8,128)}', space=vmem, size = 0x2000, scoped, tag = 'scratch operand']
  %s0 = inlined_call_operand.hbm [shape: f32[16,32], index: 0, kind: input, shape index: {}]
  %s1 = inlined_call_operand.hbm [shape: f32[32,32], index: 1, kind: input, shape index: {}]
  %s2 = inlined_call_operand.vmem [shape: f32[1,32], index: 2, kind: input, shape index: {}]
  %s3 = inlined_call_operand.hbm [shape: bf16[16,32], index: 3, kind: output, shape index: {}]
  %s4 = sld [smem:[#allocation0]]
  $region38: #{tpu_custom_call.1} parent=0
    _
  %s6 = ssub.s32 1, %s4
  %s7 = scalar_select 0, %s6, %s4
  $region1: #{tpu_custom_call.1} parent=0
    #allocation3 [shape = 'u8[8192]{0}', space=vmem, size = 0x2000, scoped, tag = 'input window, operand 0, single buffered']
    #allocation4 [shape = 's32[1]{0}', space=sflag, size = 0x4, scoped, tag = 'scoped memory for tpu_custom_call.1']
    #allocation5 [shape = 's32[1]{0}', space=sflag, size = 0x4, scoped, tag = 'scoped memory for tpu_custom_call.1']
    #allocation6 [shape = 'u8[16384]{0}', space=vmem, size = 0x4000, scoped, tag = 'input window, operand 1, single buffered']
    #allocation7 [shape = 's32[1]{0}', space=sflag, size = 0x4, scoped, tag = 'scoped memory for tpu_custom_call.1']
    #allocation8 [shape = 'u8[4096]{0}', space=vmem, size = 0x1000, scoped, tag = 'output window, operand 0, single buffered']
    %8 = vsyncpa [#allocation4], 0
    %9 = vsyncpa [#allocation7], 0
    %10 = vsyncpa [#allocation5], 0
    // Predicated region
    $region2: #{tpu_custom_call.1} parent=1 // pred_check
      _
    $region3: #{tpu_custom_call.1} parent=1 // pred_check_branch
      %12 = sbr.rel (0) target = $region5
    $region4: #{tpu_custom_call.1} parent=1 // pred_region
      %14 = vsyncadd [#allocation4], 0
      %s15 = sshll.u32 %s0, 4
      %s16 = int_to_ptr.hbm [resolvable:$true] %s15
      %s17 = sshll.u32 [#allocation3], 4
      %s18 = int_to_ptr.vmem [resolvable:$true] %s17
      %23 = dma.hbm_to_vmem [thread:$0]  %s16, 256, %s18, [#allocation4], 128, 128, 8
    $region5: #{tpu_custom_call.1} parent=1 // pred_fallthru
      _
    // Predicated region
    $region6: #{tpu_custom_call.1} parent=1 // pred_check
      _
    $region7: #{tpu_custom_call.1} parent=1 // pred_check_branch
      %25 = sbr.rel (0) target = $region9
    $region8: #{tpu_custom_call.1} parent=1 // pred_region
      %27 = vsyncadd [#allocation7], 0
      %s28 = sshll.u32 %s1, 4
      %s29 = int_to_ptr.hbm [resolvable:$true] %s28
      %s30 = sshll.u32 [#allocation6], 4
      %s31 = int_to_ptr.vmem [resolvable:$true] %s30
      %36 = dma.hbm_to_vmem [thread:$0]  %s29, 512, %s31, [#allocation7], 128, 128, 8
    $region9: #{tpu_custom_call.1} parent=1 // pred_fallthru
      _
    // Predicated region
    $region10: #{tpu_custom_call.1} parent=1 // pred_check
      _
    $region11: #{tpu_custom_call.1} parent=1 // pred_check_branch
      %38 = sbr.rel (0) target = $region13
    $region12: #{tpu_custom_call.1} parent=1 // pred_region
      _
    $region13: #{tpu_custom_call.1} parent=1 // pred_fallthru
      _
    // Predicated region
    $region14: #{tpu_custom_call.1} parent=1 // pred_check
      _
    $region15: #{tpu_custom_call.1} parent=1 // pred_check_branch
      %40 = sbr.rel (0) target = $region17
    $region16: #{tpu_custom_call.1} parent=1 // pred_region
      %42 = dma.done [#allocation4], 256
    $region17: #{tpu_custom_call.1} parent=1 // pred_fallthru
      _
    // Predicated region
    $region18: #{tpu_custom_call.1} parent=1 // pred_check
      _
    $region19: #{tpu_custom_call.1} parent=1 // pred_check_branch
      %44 = sbr.rel (0) target = $region21
    $region20: #{tpu_custom_call.1} parent=1 // pred_region
      %46 = dma.done [#allocation7], 512
    $region21: #{tpu_custom_call.1} parent=1 // pred_fallthru
      _
    %p48 = scmp.eq.s32.totalorder 0, 0
    // Predicated region
    $region22: #{tpu_custom_call.1} parent=1 // pred_check
      %p49 = pneg %p48
    $region23: #{tpu_custom_call.1} parent=1 // pred_check_branch
      %51 = sbr.rel (%p49) target = $region25
    $region24: #{tpu_custom_call.1} parent=1 // pred_region
      %vm52 = vcmask 261120
      %53 = vst.msk [vmem:[#allocation2] sm:$0xff] %vm52, 0.0
      %54 = vst.msk [vmem:[#allocation2 + $0x8] sm:$0xff] %vm52, 0.0
    $region25: #{tpu_custom_call.1} parent=1 // pred_fallthru
      _
    %v55 = vld [vmem:[#allocation3] sm:$0xff]
    %v56 = vld [vmem:[#allocation3 + $0x8] sm:$0xff]
    %v57 = vpack.c.bf16 %v56, %v55
    %v58 = vld [vmem:[#allocation6] sm:$0xff]
    %v59 = vld [vmem:[#allocation6 + $0x8] sm:$0xff]
    %v60 = vld [vmem:[#allocation6 + $0x10] sm:$0xff]
    %v61 = vld [vmem:[#allocation6 + $0x18] sm:$0xff]
    %v62 = vpack.c.bf16 %v59, %v58
    %v63 = vpack.c.bf16 %v61, %v60
    %v64 = vld [vmem:[#allocation2] sm:$0xff]
    %v65 = vld [vmem:[#allocation2 + $0x8] sm:$0xff]
    %vm66 = vcmask 261120
    %v68 = vsel %vm66, %v57, 0
    %v71 = vsel %vm66, %v62, 0
    %v74 = vsel %vm66, %v63, 0
    %76 = vmatpush.bf16.xpose.msra.mxu0 0
    %77 = vmatpush.bf16.xpose.msra.mxu0 0
    %78 = vmatpush.bf16.xpose.msra.mxu0 0
    %79 = vmatpush.bf16.xpose.msra.mxu0 0
    %80 = vmatpush.bf16.xpose.msra.mxu0 0
    %81 = vmatpush.bf16.xpose.msra.mxu0 0
    %82 = vmatpush.bf16.xpose.msra.mxu0 %v74
    %83 = vmatpush.bf16.xpose.msra.mxu0 %v71
    %84 = vmatmul.bf16.gmra.mxu0 %v68
    %v85 = vpop.f32.mrf.mxu0
    %v86 = vadd.f32 0.0, %v85
    %v87 = vpop.f32.mrf.mxu0
    %v88 = vadd.f32 0.0, %v87
    %89 = vdwg.mxu0
    %v90 = vadd.f32 %v64, %v86
    %v91 = vadd.f32 %v65, %v88
    %92 = vst.msk [vmem:[#allocation2] sm:$0xff] %vm66, %v90
    %93 = vst.msk [vmem:[#allocation2 + $0x8] sm:$0xff] %vm66, %v91
    // Predicated region
    $region26: #{tpu_custom_call.1} parent=1 // pred_check
      %p94 = pneg %p48
    $region27: #{tpu_custom_call.1} parent=1 // pred_check_branch
      %96 = sbr.rel (%p94) target = $region29
    $region28: #{tpu_custom_call.1} parent=1 // pred_region
      %v97 = vld [vmem:[#allocation2] sm:$0xff]
      %v98 = vld [vmem:[#allocation2 + $0x8] sm:$0xff]
      %v99 = vld [vmem:[%s2] sm:$0x1]
      %v101 = vperm.slane %v99, 0
      %v103 = vadd.f32 %v97, %v101
      %v104 = vadd.f32 %v98, %v101
      %v105 = vpack.c.bf16 %v103, %v103
      %v106 = vpack.c.bf16 %v104, %v104
      %vm107 = vcmask 257024
      %108 = vst.msk [vmem:[#allocation8] sm:$0xf] %vm107, %v105
      %109 = vst.msk [vmem:[#allocation8 + $0x4] sm:$0xf] %vm107, %v106
    $region29: #{tpu_custom_call.1} parent=1 // pred_fallthru
      _
    // Predicated region
    $region30: #{tpu_custom_call.1} parent=1 // pred_check
      _
    $region31: #{tpu_custom_call.1} parent=1 // pred_check_branch
      %111 = sbr.rel (0) target = $region33
    $region32: #{tpu_custom_call.1} parent=1 // pred_region
      %113 = vsyncadd [#allocation5], 0
      %s114 = sshll.u32 [#allocation8], 4
      %s115 = int_to_ptr.vmem [resolvable:$true] %s114
      %s116 = sshll.u32 %s3, 4
      %s117 = int_to_ptr.hbm [resolvable:$true] %s116
      %122 = dma.vmem_to_hbm [thread:$0]  %s115, 128, %s117, [#allocation5], 64, 64, 4
    $region33: #{tpu_custom_call.1} parent=1 // pred_fallthru
      _
    // Predicated region
    $region34: #{tpu_custom_call.1} parent=1 // pred_check
      _
    $region35: #{tpu_custom_call.1} parent=1 // pred_check_branch
      %124 = sbr.rel (0) target = $region37
    $region36: #{tpu_custom_call.1} parent=1 // pred_region
      %126 = dma.done [#allocation5], 128
    $region37: #{tpu_custom_call.1} parent=1 // pred_fallthru
      _
    %127 = vsyncpa [#allocation4], 1
    %128 = vsyncpa [#allocation7], 1
    %129 = vsyncpa [#allocation5], 1

</llo_original>
